<compile_context>
chip_gen: v5e
topology: v5e:2x2
jax: 0.10.0
libtpu: 0.0.40
codegen_flags: <defaults>
</compile_context>

<pallas_src>
import functools

import jax
import jax.numpy as jnp
from jax.experimental import pallas as pl
from jax.experimental.pallas import tpu as pltpu


def _round_up(x, m):
    return ((x + m - 1) // m) * m


def _rating_kernel(u_ref, i_ref,
                   w_top_ref, w_bot_ref, wh1_ref, wf_ref,
                   b01_ref, bf_ref,
                   rating_ref, feat_ref):
    """Fused MLP forward for one batch tile (`pack` rows packed per lane-row).

    u_ref:      [tr, pack*user_dim]      i_ref:   [tr, pack*item_dim]
    w_top_ref:  [pack*user_dim, pack*H]  (bf16, block-diagonal)
    w_bot_ref:  [pack*item_dim, pack*H]  (bf16, block-diagonal)
    wh1_ref:    [pack*H, pack*H]         (bf16, block-diagonal)
    wf_ref:     [pack*H, pack]           (bf16, block-diagonal)
    b01_ref:    [2, pack*H]  row0 = fused layer-0 bias, row1 = hidden-1 bias
    bf_ref:     [1, pack]
    rating_ref: [tr, pack]               feat_ref: [tr, pack*H]
    """
    u = u_ref[...].astype(jnp.bfloat16)
    v = i_ref[...].astype(jnp.bfloat16)

    # Layer 0 (activation-free W1 already folded in): sigmoid(u@Wt + v@Wb + b0).
    h = (jnp.dot(u, w_top_ref[...], preferred_element_type=jnp.float32)
         + jnp.dot(v, w_bot_ref[...], preferred_element_type=jnp.float32)
         + b01_ref[0:1, :])
    h = jax.nn.sigmoid(h)

    # Hidden layer 1: Linear + Sigmoid (bf16 MXU inputs, f32 accumulation).
    h = (jnp.dot(h.astype(jnp.bfloat16), wh1_ref[...],
                 preferred_element_type=jnp.float32)
         + b01_ref[1:2, :])
    h = jax.nn.sigmoid(h)

    # Lane-dense feature store (128 valid lanes per row instead of 32).
    feat_ref[...] = h.astype(feat_ref.dtype)

    # Final Linear(H -> 1): one output column per packed row group.
    r = (jnp.dot(h.astype(jnp.bfloat16), wf_ref[...],
                 preferred_element_type=jnp.float32)
         + bf_ref[...])
    rating_ref[...] = r.astype(rating_ref.dtype)


def prepare_params(params, user_dim):
    """One-time weight preparation (hoisted off the per-call hot path).

    Folds the activation-free W1 into hidden layer 0, replicates all weights
    block-diagonally `pack` times (pack = 128 // hidden when that is an integer,
    else 1), casts matmul weights to bf16 and packs the biases.
    """
    hidden = params["wh1"].shape[1]
    pack = 128 // hidden if (hidden <= 128 and 128 % hidden == 0) else 1

    # Exact algebraic fusion of W1 (no activation) into hidden layer 0.
    w_fused = params["w1"] @ params["wh0"]                       # [input_dim, H]
    b_fused = params["b1"] @ params["wh0"] + params["bh0"]       # [1, H]

    eye = jnp.eye(pack, dtype=jnp.float32)

    def block_diag(w):  # one copy of w per packed batch row
        return jnp.kron(eye, w)

    prepared = {
        "w_top": block_diag(w_fused[:user_dim]).astype(jnp.bfloat16),
        "w_bot": block_diag(w_fused[user_dim:]).astype(jnp.bfloat16),
        "wh1":   block_diag(params["wh1"]).astype(jnp.bfloat16),
        "wf":    block_diag(params["wf"]).astype(jnp.bfloat16),   # [pack*H, pack]
        "b01":   jnp.concatenate([jnp.tile(b_fused, (1, pack)),
                                  jnp.tile(params["bh1"], (1, pack))], axis=0),
        "bf":    jnp.tile(params["bf"], (1, pack)),               # [1, pack]
    }
    return prepared


def rating_prediction(user_embeddings, item_embeddings, prepared, *,
                      batch_tile=8192):
    """Forward pass.  `prepared` comes from prepare_params (compute it once)."""
    B, user_dim = user_embeddings.shape
    _, item_dim = item_embeddings.shape
    pack = prepared["bf"].shape[1]            # static: rows packed per lane-row
    hp = prepared["b01"].shape[1]             # pack * hidden
    hidden = hp // pack

    # --- pack `pack` consecutive rows onto one lane row (free contiguous reshape) ---
    Bp = _round_up(B, pack)
    if Bp != B:
        # Rare tiny remainder pad (to a multiple of `pack`, NOT to the tile size).
        pad = Bp - B
        user_embeddings = jnp.pad(user_embeddings, ((0, pad), (0, 0)))
        item_embeddings = jnp.pad(item_embeddings, ((0, pad), (0, 0)))
    R = Bp // pack
    u2 = user_embeddings.reshape(R, pack * user_dim)
    i2 = item_embeddings.reshape(R, pack * item_dim)

    # --- large batch tiles; ragged last block handled by Pallas (no pad copy) ---
    tr_cap = max(8, (int(batch_tile) // pack) // 8 * 8)
    tr = min(tr_cap, _round_up(R, 8))
    grid = (pl.cdiv(R, tr),)

    def row_spec(cols):
        return pl.BlockSpec((tr, cols), lambda i: (i, 0))

    def const_spec(shape):
        # grid-invariant block: DMA'd once, stays resident across all steps.
        return pl.BlockSpec(shape, lambda i: (0,) * len(shape))

    rating_p, feat_p = pl.pallas_call(
        _rating_kernel,
        out_shape=(
            jax.ShapeDtypeStruct((R, pack), jnp.float32),
            jax.ShapeDtypeStruct((R, hp), jnp.float32),
        ),
        grid_spec=pltpu.PrefetchScalarGridSpec(
            num_scalar_prefetch=0,
            grid=grid,
            in_specs=[
                row_spec(pack * user_dim),               # packed user embeddings
                row_spec(pack * item_dim),               # packed item embeddings
                const_spec(prepared["w_top"].shape),     # bf16 block-diag weights
                const_spec(prepared["w_bot"].shape),
                const_spec(prepared["wh1"].shape),
                const_spec(prepared["wf"].shape),
                const_spec(prepared["b01"].shape),       # packed biases
                const_spec(prepared["bf"].shape),
            ],
            out_specs=[
                row_spec(pack),                          # packed rating
                row_spec(hp),                            # packed (lane-dense) features
            ],
        ),
        compiler_params=pltpu.CompilerParams(
            dimension_semantics=("parallel",)),
    )(u2, i2, prepared["w_top"], prepared["w_bot"], prepared["wh1"],
      prepared["wf"], prepared["b01"], prepared["bf"])

    # Free contiguous reshapes back to the module's output shapes.
    rating = rating_p.reshape(Bp, 1)
    features = feat_p.reshape(Bp, hidden)
    if Bp != B:
        rating = rating[:B]
        features = features[:B]
    return rating, features


def init_params(key, input_dim, hidden):
    """Deterministic synthetic parameter init (shapes match the torch module)."""
    ks = jax.random.split(key, 8)
    s = 0.1
    return {
        "w1":  s * jax.random.normal(ks[0], (input_dim, hidden), jnp.float32),
        "b1":  s * jax.random.normal(ks[1], (1, hidden), jnp.float32),
        "wh0": s * jax.random.normal(ks[2], (hidden, hidden), jnp.float32),
        "bh0": s * jax.random.normal(ks[3], (1, hidden), jnp.float32),
        "wh1": s * jax.random.normal(ks[4], (hidden, hidden), jnp.float32),
        "bh1": s * jax.random.normal(ks[5], (1, hidden), jnp.float32),
        "wf":  s * jax.random.normal(ks[6], (hidden, 1), jnp.float32),
        "bf":  s * jax.random.normal(ks[7], (1, 1), jnp.float32),
    }


def _reference(user, item, p):
    """Pure-JAX f32 reference mirroring the PyTorch forward."""
    x = jnp.concatenate([user, item], axis=-1)
    h = x @ p["w1"] + p["b1"]
    h = jax.nn.sigmoid(h @ p["wh0"] + p["bh0"])
    h = jax.nn.sigmoid(h @ p["wh1"] + p["bh1"])
    return h @ p["wf"] + p["bf"], h


if __name__ == "__main__":
    batch = 256
    user_dim = 16
    item_dim = 16
    input_dim = user_dim + item_dim   # 32
    hidden = 32

    key = jax.random.PRNGKey(0)
    k_u, k_i, k_p = jax.random.split(key, 3)
    user_emb = jax.random.normal(k_u, (batch, user_dim), jnp.float32)
    item_emb = jax.random.normal(k_i, (batch, item_dim), jnp.float32)
    params = init_params(k_p, input_dim, hidden)

    # One-time weight preparation, then a jitted forward on the hot path.
    prepared = prepare_params(params, user_dim)
    forward = jax.jit(functools.partial(rating_prediction, batch_tile=8192))

    rating, features = forward(user_emb, item_emb, prepared)
    jax.block_until_ready(rating)
    jax.block_until_ready(features)

    ref_rating, ref_features = _reference(user_emb, item_emb, params)
    # bf16 MXU inputs (f32 accumulation) + exact W1/Wh0 fusion -> looser tolerance
    # than the pure-f32 path; sigmoid-bounded activations keep the error small.
    assert jnp.allclose(rating, ref_rating, atol=2e-2, rtol=2e-2), "rating mismatch"
    assert jnp.allclose(features, ref_features, atol=2e-2, rtol=2e-2), "features mismatch"
    assert rating.shape == (batch, 1) and features.shape == (batch, hidden)

    print("KERNEL_OK")
</pallas_src>

<mosaic_0001>
module attributes {stable_mosaic.version = 11 : i64} {
  func.func @_rating_kernel(%arg0: i32, %arg1: memref<64x64xf32, #tpu.memory_space<vmem>>, %arg2: memref<64x64xf32, #tpu.memory_space<vmem>>, %arg3: memref<64x128xbf16, #tpu.memory_space<vmem>>, %arg4: memref<64x128xbf16, #tpu.memory_space<vmem>>, %arg5: memref<128x128xbf16, #tpu.memory_space<vmem>>, %arg6: memref<128x4xbf16, #tpu.memory_space<vmem>>, %arg7: memref<2x128xf32, #tpu.memory_space<vmem>>, %arg8: memref<1x4xf32, #tpu.memory_space<vmem>>, %arg9: memref<64x4xf32, #tpu.memory_space<vmem>>, %arg10: memref<64x128xf32, #tpu.memory_space<vmem>>) attributes {dimension_semantics = [#tpu.dimension_semantics<parallel>], iteration_bounds = array<i64: 1>, scalar_prefetch = 0 : i64, scratch_operands = 0 : i64, tpu.core_type = #tpu.core_type<tc>, window_params = [{transform_indices = @transform_0, window_bounds = array<i64: 64, 64>}, {transform_indices = @transform_1, window_bounds = array<i64: 64, 64>}, {pipeline_mode = #tpu.pipeline_mode<synchronous>, transform_indices = @transform_2, window_bounds = array<i64: 64, 128>}, {pipeline_mode = #tpu.pipeline_mode<synchronous>, transform_indices = @transform_3, window_bounds = array<i64: 64, 128>}, {pipeline_mode = #tpu.pipeline_mode<synchronous>, transform_indices = @transform_4, window_bounds = array<i64: 128, 128>}, {pipeline_mode = #tpu.pipeline_mode<synchronous>, transform_indices = @transform_5, window_bounds = array<i64: 128, 4>}, {pipeline_mode = #tpu.pipeline_mode<synchronous>, transform_indices = @transform_6, window_bounds = array<i64: 2, 128>}, {pipeline_mode = #tpu.pipeline_mode<synchronous>, transform_indices = @transform_7, window_bounds = array<i64: 1, 4>}, {transform_indices = @transform_8, window_bounds = array<i64: 64, 4>}, {transform_indices = @transform_9, window_bounds = array<i64: 64, 128>}]} {
    %c0 = arith.constant 0 : index
    %c0_0 = arith.constant 0 : index
    %0 = vector.load %arg1[%c0, %c0_0] : memref<64x64xf32, #tpu.memory_space<vmem>>, vector<64x64xf32>
    %1 = arith.truncf %0 : vector<64x64xf32> to vector<64x64xbf16>
    %c0_1 = arith.constant 0 : index
    %c0_2 = arith.constant 0 : index
    %2 = vector.load %arg2[%c0_1, %c0_2] : memref<64x64xf32, #tpu.memory_space<vmem>>, vector<64x64xf32>
    %3 = arith.truncf %2 : vector<64x64xf32> to vector<64x64xbf16>
    %c0_3 = arith.constant 0 : index
    %c0_4 = arith.constant 0 : index
    %4 = vector.load %arg3[%c0_3, %c0_4] : memref<64x128xbf16, #tpu.memory_space<vmem>>, vector<64x128xbf16>
    %cst = arith.constant dense<0.000000e+00> : vector<64x128xf32>
    %5 = tpu.matmul %1, %4, %cst {dimension_numbers = #tpu.dot_dimension_numbers<[1], [0], [0], [1], [0, 0, 1, 1], [], []>} : vector<64x64xbf16>, vector<64x128xbf16>, vector<64x128xf32> -> vector<64x128xf32>
    %c0_5 = arith.constant 0 : index
    %c0_6 = arith.constant 0 : index
    %6 = vector.load %arg4[%c0_5, %c0_6] : memref<64x128xbf16, #tpu.memory_space<vmem>>, vector<64x128xbf16>
    %cst_7 = arith.constant dense<0.000000e+00> : vector<64x128xf32>
    %7 = tpu.matmul %3, %6, %cst_7 {dimension_numbers = #tpu.dot_dimension_numbers<[1], [0], [0], [1], [0, 0, 1, 1], [], []>} : vector<64x64xbf16>, vector<64x128xbf16>, vector<64x128xf32> -> vector<64x128xf32>
    %8 = arith.addf %5, %7 : vector<64x128xf32>
    %c0_8 = arith.constant 0 : index
    %c0_9 = arith.constant 0 : index
    %9 = vector.load %arg7[%c0_8, %c0_9] : memref<2x128xf32, #tpu.memory_space<vmem>>, vector<1x128xf32>
    %10 = vector.broadcast %9 : vector<1x128xf32> to vector<64x128xf32>
    %11 = arith.addf %8, %10 : vector<64x128xf32>
    %12 = arith.negf %11 : vector<64x128xf32>
    %13 = math.exp %12 : vector<64x128xf32>
    %cst_10 = arith.constant 1.000000e+00 : f32
    %14 = vector.broadcast %cst_10 : f32 to vector<64x128xf32>
    %15 = arith.addf %14, %13 : vector<64x128xf32>
    %16 = arith.divf %14, %15 : vector<64x128xf32>
    %17 = arith.truncf %16 : vector<64x128xf32> to vector<64x128xbf16>
    %c0_11 = arith.constant 0 : index
    %c0_12 = arith.constant 0 : index
    %18 = vector.load %arg5[%c0_11, %c0_12] : memref<128x128xbf16, #tpu.memory_space<vmem>>, vector<128x128xbf16>
    %cst_13 = arith.constant dense<0.000000e+00> : vector<64x128xf32>
    %19 = tpu.matmul %17, %18, %cst_13 {dimension_numbers = #tpu.dot_dimension_numbers<[1], [0], [0], [1], [0, 0, 1, 1], [], []>} : vector<64x128xbf16>, vector<128x128xbf16>, vector<64x128xf32> -> vector<64x128xf32>
    %c1 = arith.constant 1 : index
    %c0_14 = arith.constant 0 : index
    %20 = vector.load %arg7[%c1, %c0_14] : memref<2x128xf32, #tpu.memory_space<vmem>>, vector<1x128xf32>
    %21 = vector.broadcast %20 : vector<1x128xf32> to vector<64x128xf32>
    %22 = arith.addf %19, %21 : vector<64x128xf32>
    %23 = arith.negf %22 : vector<64x128xf32>
    %24 = math.exp %23 : vector<64x128xf32>
    %cst_15 = arith.constant 1.000000e+00 : f32
    %25 = vector.broadcast %cst_15 : f32 to vector<64x128xf32>
    %26 = arith.addf %25, %24 : vector<64x128xf32>
    %27 = arith.divf %25, %26 : vector<64x128xf32>
    %c0_16 = arith.constant 0 : index
    %c0_17 = arith.constant 0 : index
    %28 = vector.load %arg10[%c0_16, %c0_17] : memref<64x128xf32, #tpu.memory_space<vmem>>, vector<64x128xf32>
    tpu.vector_store %arg10[%c0_16, %c0_17], %27 {strides = array<i32>} : memref<64x128xf32, #tpu.memory_space<vmem>>, vector<64x128xf32>,
    %29 = arith.truncf %27 : vector<64x128xf32> to vector<64x128xbf16>
    %c0_18 = arith.constant 0 : index
    %c0_19 = arith.constant 0 : index
    %30 = vector.load %arg6[%c0_18, %c0_19] : memref<128x4xbf16, #tpu.memory_space<vmem>>, vector<128x4xbf16>
    %cst_20 = arith.constant dense<0.000000e+00> : vector<64x4xf32>
    %31 = tpu.matmul %29, %30, %cst_20 {dimension_numbers = #tpu.dot_dimension_numbers<[1], [0], [0], [1], [0, 0, 1, 1], [], []>} : vector<64x128xbf16>, vector<128x4xbf16>, vector<64x4xf32> -> vector<64x4xf32>
    %c0_21 = arith.constant 0 : index
    %c0_22 = arith.constant 0 : index
    %32 = vector.load %arg8[%c0_21, %c0_22] : memref<1x4xf32, #tpu.memory_space<vmem>>, vector<1x4xf32>
    %33 = vector.broadcast %32 : vector<1x4xf32> to vector<64x4xf32>
    %34 = arith.addf %31, %33 : vector<64x4xf32>
    %c0_23 = arith.constant 0 : index
    %c0_24 = arith.constant 0 : index
    %35 = vector.load %arg9[%c0_23, %c0_24] : memref<64x4xf32, #tpu.memory_space<vmem>>, vector<64x4xf32>
    tpu.vector_store %arg9[%c0_23, %c0_24], %34 {strides = array<i32>} : memref<64x4xf32, #tpu.memory_space<vmem>>, vector<64x4xf32>,
    return
  }
  func.func @transform_0(%arg0: i32) -> (i32, i32) {
    %c0_i32 = arith.constant 0 : i32
    %c0_i32_0 = arith.constant 0 : i32
    return %arg0, %c0_i32 : i32, i32
  }
  func.func @transform_1(%arg0: i32) -> (i32, i32) {
    %c0_i32 = arith.constant 0 : i32
    %c0_i32_0 = arith.constant 0 : i32
    return %arg0, %c0_i32 : i32, i32
  }
  func.func @transform_2(%arg0: i32) -> (i32, i32) {
    %c0_i32 = arith.constant 0 : i32
    %c0_i32_0 = arith.constant 0 : i32
    %c0_i32_1 = arith.constant 0 : i32
    return %c0_i32, %c0_i32_0 : i32, i32
  }
  func.func @transform_3(%arg0: i32) -> (i32, i32) {
    %c0_i32 = arith.constant 0 : i32
    %c0_i32_0 = arith.constant 0 : i32
    %c0_i32_1 = arith.constant 0 : i32
    return %c0_i32, %c0_i32_0 : i32, i32
  }
  func.func @transform_4(%arg0: i32) -> (i32, i32) {
    %c0_i32 = arith.constant 0 : i32
    %c0_i32_0 = arith.constant 0 : i32
    %c0_i32_1 = arith.constant 0 : i32
    return %c0_i32, %c0_i32_0 : i32, i32
  }
  func.func @transform_5(%arg0: i32) -> (i32, i32) {
    %c0_i32 = arith.constant 0 : i32
    %c0_i32_0 = arith.constant 0 : i32
    %c0_i32_1 = arith.constant 0 : i32
    return %c0_i32, %c0_i32_0 : i32, i32
  }
  func.func @transform_6(%arg0: i32) -> (i32, i32) {
    %c0_i32 = arith.constant 0 : i32
    %c0_i32_0 = arith.constant 0 : i32
    %c0_i32_1 = arith.constant 0 : i32
    return %c0_i32, %c0_i32_0 : i32, i32
  }
  func.func @transform_7(%arg0: i32) -> (i32, i32) {
    %c0_i32 = arith.constant 0 : i32
    %c0_i32_0 = arith.constant 0 : i32
    %c0_i32_1 = arith.constant 0 : i32
    return %c0_i32, %c0_i32_0 : i32, i32
  }
  func.func @transform_8(%arg0: i32) -> (i32, i32) {
    %c0_i32 = arith.constant 0 : i32
    %c0_i32_0 = arith.constant 0 : i32
    return %arg0, %c0_i32 : i32, i32
  }
  func.func @transform_9(%arg0: i32) -> (i32, i32) {
    %c0_i32 = arith.constant 0 : i32
    %c0_i32_0 = arith.constant 0 : i32
    return %arg0, %c0_i32 : i32, i32
  }
}

</mosaic_0001>

<llo_original>
// kernel: rating_prediction.1
$region0: #{rating_prediction.1}
  #allocation0 [shape = 'u32[]', space=smem, size = 0x4, offset = 0x4, fixed_abs, tag = 'smem constant byte address 0x4 - core index']
  #allocation1 [shape = 'u32[72,128]{1,0:T(1,128)}', space=vmem, size = 0x9000, scoped, tag = 'internal scratch']
  %s0 = inlined_call_operand.vmem [shape: f32[64,64], index: 0, kind: input, shape index: {}]
  %s1 = inlined_call_operand.vmem [shape: f32[64,64], index: 1, kind: input, shape index: {}]
  %s2 = inlined_call_operand.vmem [shape: bf16[64,128], index: 2, kind: input, shape index: {}]
  %s3 = inlined_call_operand.vmem [shape: bf16[64,128], index: 3, kind: input, shape index: {}]
  %s4 = inlined_call_operand.vmem [shape: bf16[128,128], index: 4, kind: input, shape index: {}]
  %s5 = inlined_call_operand.vmem [shape: bf16[128,4], index: 5, kind: input, shape index: {}]
  %s6 = inlined_call_operand.vmem [shape: f32[2,128], index: 6, kind: input, shape index: {}]
  %s7 = inlined_call_operand.vmem [shape: f32[1,4], index: 7, kind: input, shape index: {}]
  %s8 = inlined_call_operand.vmem [shape: f32[64,4], index: 8, kind: output, shape index: {0}]
  %s9 = inlined_call_operand.vmem [shape: f32[64,128], index: 9, kind: output, shape index: {1}]
  %10 = xla_tuple %s8, %s9
  %s11 = sld [smem:[#allocation0]]
  $region50: #{rating_prediction.1} parent=0
    _
  %s13 = ssub.s32 1, %s11
  %s14 = scalar_select 0, %s13, %s11
  // Predicated region
  $region2: #{rating_prediction.1} parent=0 // pred_check
    _
  $region3: #{rating_prediction.1} parent=0 // pred_check_branch
    %16 = sbr.rel (0) target = $region5
  $region4: #{rating_prediction.1} parent=0 // pred_region
    _
  $region5: #{rating_prediction.1} parent=0 // pred_fallthru
    _
  // Predicated region
  $region6: #{rating_prediction.1} parent=0 // pred_check
    _
  $region7: #{rating_prediction.1} parent=0 // pred_check_branch
    %18 = sbr.rel (0) target = $region9
  $region8: #{rating_prediction.1} parent=0 // pred_region
    _
  $region9: #{rating_prediction.1} parent=0 // pred_fallthru
    _
  // Predicated region
  $region10: #{rating_prediction.1} parent=0 // pred_check
    _
  $region11: #{rating_prediction.1} parent=0 // pred_check_branch
    %20 = sbr.rel (0) target = $region13
  $region12: #{rating_prediction.1} parent=0 // pred_region
    _
  $region13: #{rating_prediction.1} parent=0 // pred_fallthru
    _
  // Predicated region
  $region14: #{rating_prediction.1} parent=0 // pred_check
    _
  $region15: #{rating_prediction.1} parent=0 // pred_check_branch
    %22 = sbr.rel (0) target = $region17
  $region16: #{rating_prediction.1} parent=0 // pred_region
    _
  $region17: #{rating_prediction.1} parent=0 // pred_fallthru
    _
  // Predicated region
  $region18: #{rating_prediction.1} parent=0 // pred_check
    _
  $region19: #{rating_prediction.1} parent=0 // pred_check_branch
    %24 = sbr.rel (0) target = $region21
  $region20: #{rating_prediction.1} parent=0 // pred_region
    _
  $region21: #{rating_prediction.1} parent=0 // pred_fallthru
    _
  // Predicated region
  $region22: #{rating_prediction.1} parent=0 // pred_check
    _
  $region23: #{rating_prediction.1} parent=0 // pred_check_branch
    %26 = sbr.rel (0) target = $region25
  $region24: #{rating_prediction.1} parent=0 // pred_region
    _
  $region25: #{rating_prediction.1} parent=0 // pred_fallthru
    _
  // Predicated region
  $region26: #{rating_prediction.1} parent=0 // pred_check
    _
  $region27: #{rating_prediction.1} parent=0 // pred_check_branch
    %28 = sbr.rel (0) target = $region29
  $region28: #{rating_prediction.1} parent=0 // pred_region
    _
  $region29: #{rating_prediction.1} parent=0 // pred_fallthru
    _
  // Predicated region
  $region30: #{rating_prediction.1} parent=0 // pred_check
    _
  $region31: #{rating_prediction.1} parent=0 // pred_check_branch
    %30 = sbr.rel (0) target = $region33
  $region32: #{rating_prediction.1} parent=0 // pred_region
    _
  $region33: #{rating_prediction.1} parent=0 // pred_fallthru
    _
  %v32 = vld [vmem:[%s0] sm:$0xff]
  %v33 = vld [vmem:[%s0 + $0x8] sm:$0xff]
  %v34 = vld [vmem:[%s0 + $0x10] sm:$0xff]
  %v35 = vld [vmem:[%s0 + $0x18] sm:$0xff]
  %v36 = vld [vmem:[%s0 + $0x20] sm:$0xff]
  %v37 = vld [vmem:[%s0 + $0x28] sm:$0xff]
  %v38 = vld [vmem:[%s0 + $0x30] sm:$0xff]
  %v39 = vld [vmem:[%s0 + $0x38] sm:$0xff]
  %v40 = vpack.c.bf16 %v33, %v32
  %v41 = vpack.c.bf16 %v35, %v34
  %v42 = vpack.c.bf16 %v37, %v36
  %v43 = vpack.c.bf16 %v39, %v38
  %v44 = vld [vmem:[%s1] sm:$0xff]
  %v45 = vld [vmem:[%s1 + $0x8] sm:$0xff]
  %v46 = vld [vmem:[%s1 + $0x10] sm:$0xff]
  %v47 = vld [vmem:[%s1 + $0x18] sm:$0xff]
  %v48 = vld [vmem:[%s1 + $0x20] sm:$0xff]
  %v49 = vld [vmem:[%s1 + $0x28] sm:$0xff]
  %v50 = vld [vmem:[%s1 + $0x30] sm:$0xff]
  %v51 = vld [vmem:[%s1 + $0x38] sm:$0xff]
  %v52 = vpack.c.bf16 %v45, %v44
  %v53 = vpack.c.bf16 %v47, %v46
  %v54 = vpack.c.bf16 %v49, %v48
  %v55 = vpack.c.bf16 %v51, %v50
  %v56 = vld [vmem:[%s2] sm:$0xf]
  %v57 = vld [vmem:[%s2 + $0x4] sm:$0xf]
  %v58 = vld [vmem:[%s2 + $0x8] sm:$0xf]
  %v59 = vld [vmem:[%s2 + $0xc] sm:$0xf]
  %v60 = vld [vmem:[%s2 + $0x10] sm:$0xf]
  %v61 = vld [vmem:[%s2 + $0x14] sm:$0xf]
  %v62 = vld [vmem:[%s2 + $0x18] sm:$0xf]
  %v63 = vld [vmem:[%s2 + $0x1c] sm:$0xf]
  %v64 = vld [vmem:[%s3] sm:$0xf]
  %v65 = vld [vmem:[%s3 + $0x4] sm:$0xf]
  %v66 = vld [vmem:[%s3 + $0x8] sm:$0xf]
  %v67 = vld [vmem:[%s3 + $0xc] sm:$0xf]
  %v68 = vld [vmem:[%s3 + $0x10] sm:$0xf]
  %v69 = vld [vmem:[%s3 + $0x14] sm:$0xf]
  %v70 = vld [vmem:[%s3 + $0x18] sm:$0xf]
  %v71 = vld [vmem:[%s3 + $0x1c] sm:$0xf]
  %v80 = vunpack.c.l.b16 %v64
  %v81 = vunpack.c.l.b16 %v65
  %v82 = vunpack.c.l.b16 %v66
  %v83 = vunpack.c.l.b16 %v67
  %v84 = vunpack.c.l.b16 %v68
  %v85 = vunpack.c.l.b16 %v69
  %v86 = vunpack.c.l.b16 %v70
  %v87 = vunpack.c.l.b16 %v71
  %v88 = vpack.c.b16 %v81, %v80
  %v89 = vpack.c.b16 %v83, %v82
  %v90 = vpack.c.b16 %v85, %v84
  %v91 = vpack.c.b16 %v87, %v86
  %vm96 = vcmask 523264
  %v98 = vsel %vm96, %v52, 0
  %v101 = vsel %vm96, %v53, 0
  %v104 = vsel %vm96, %v54, 0
  %v107 = vsel %vm96, %v55, 0
  %109 = vmatpush.bf16.msra.mxu0 0
  %110 = vmatpush.bf16.msra.mxu0 0
  %111 = vmatpush.bf16.msra.mxu0 0
  %112 = vmatpush.bf16.msra.mxu0 0
  %113 = vmatpush.bf16.msra.mxu0 %v91
  %114 = vmatpush.bf16.msra.mxu0 %v90
  %115 = vmatpush.bf16.msra.mxu0 %v89
  %116 = vmatpush.bf16.msra.mxu0 %v88
  %117 = vmatmul.bf16.gmra.mxu0 %v98
  %v118 = vpop.f32.mrf.mxu0
  %v119 = vadd.f32 0.0, %v118
  %v120 = vpop.f32.mrf.mxu0
  %v121 = vadd.f32 0.0, %v120
  %122 = vmatmul.bf16.gmra.mxu0 %v101
  %v123 = vpop.f32.mrf.mxu0
  %v124 = vadd.f32 0.0, %v123
  %v125 = vpop.f32.mrf.mxu0
  %v126 = vadd.f32 0.0, %v125
  %127 = vmatmul.bf16.gmra.mxu0 %v104
  %v128 = vpop.f32.mrf.mxu0
  %v129 = vadd.f32 0.0, %v128
  %v130 = vpop.f32.mrf.mxu0
  %v131 = vadd.f32 0.0, %v130
  %132 = vmatmul.bf16.gmra.mxu0 %v107
  %v133 = vpop.f32.mrf.mxu0
  %v134 = vadd.f32 0.0, %v133
  %v135 = vpop.f32.mrf.mxu0
  %v136 = vadd.f32 0.0, %v135
  %137 = vdwg.mxu0
  %v146 = vunpack.c.l.b16 %v56
  %v147 = vunpack.c.l.b16 %v57
  %v148 = vunpack.c.l.b16 %v58
  %v149 = vunpack.c.l.b16 %v59
  %v150 = vunpack.c.l.b16 %v60
  %v151 = vunpack.c.l.b16 %v61
  %v152 = vunpack.c.l.b16 %v62
  %v153 = vunpack.c.l.b16 %v63
  %v154 = vpack.c.b16 %v147, %v146
  %v155 = vpack.c.b16 %v149, %v148
  %v156 = vpack.c.b16 %v151, %v150
  %v157 = vpack.c.b16 %v153, %v152
  %v163 = vsel %vm96, %v40, 0
  %v166 = vsel %vm96, %v41, 0
  %v169 = vsel %vm96, %v42, 0
  %v172 = vsel %vm96, %v43, 0
  %174 = vmatpush.bf16.msra.mxu0 0
  %175 = vmatpush.bf16.msra.mxu0 0
  %176 = vmatpush.bf16.msra.mxu0 0
  %177 = vmatpush.bf16.msra.mxu0 0
  %178 = vmatpush.bf16.msra.mxu0 %v157
  %179 = vmatpush.bf16.msra.mxu0 %v156
  %180 = vmatpush.bf16.msra.mxu0 %v155
  %181 = vmatpush.bf16.msra.mxu0 %v154
  %182 = vmatmul.bf16.gmra.mxu0 %v163
  %v183 = vpop.f32.mrf.mxu0
  %v184 = vadd.f32 %v119, %v183
  %v185 = vpop.f32.mrf.mxu0
  %v186 = vadd.f32 %v121, %v185
  %187 = vmatmul.bf16.gmra.mxu0 %v166
  %v188 = vpop.f32.mrf.mxu0
  %v189 = vadd.f32 %v124, %v188
  %v190 = vpop.f32.mrf.mxu0
  %v191 = vadd.f32 %v126, %v190
  %192 = vmatmul.bf16.gmra.mxu0 %v169
  %v193 = vpop.f32.mrf.mxu0
  %v194 = vadd.f32 %v129, %v193
  %v195 = vpop.f32.mrf.mxu0
  %v196 = vadd.f32 %v131, %v195
  %197 = vmatmul.bf16.gmra.mxu0 %v172
  %v198 = vpop.f32.mrf.mxu0
  %v199 = vadd.f32 %v134, %v198
  %v200 = vpop.f32.mrf.mxu0
  %v201 = vadd.f32 %v136, %v200
  %202 = vdwg.mxu0
  %v203 = vld [vmem:[%s6] sm:$0x1]
  %v204 = vperm.slane %v203, 0
  %v205 = vadd.f32 %v184, %v204
  %v206 = vadd.f32 %v186, %v204
  %v207 = vadd.f32 %v189, %v204
  %v208 = vadd.f32 %v191, %v204
  %v209 = vadd.f32 %v194, %v204
  %v210 = vadd.f32 %v196, %v204
  %v211 = vadd.f32 %v199, %v204
  %v212 = vadd.f32 %v201, %v204
  %v213 = vxor.u32 %v205, 2147483648
  %v214 = vxor.u32 %v206, 2147483648
  %v215 = vxor.u32 %v207, 2147483648
  %v216 = vxor.u32 %v208, 2147483648
  %v217 = vxor.u32 %v209, 2147483648
  %v218 = vxor.u32 %v210, 2147483648
  %v219 = vxor.u32 %v211, 2147483648
  %v220 = vxor.u32 %v212, 2147483648
  %v221 = vmul.f32 %v213, 1.442695
  %v222 = vpow.pop %v221
  %v223 = vmul.f32 %v214, 1.442695
  %v224 = vpow.pop %v223
  %v225 = vmul.f32 %v215, 1.442695
  %v226 = vpow.pop %v225
  %v227 = vmul.f32 %v216, 1.442695
  %v228 = vpow.pop %v227
  %v229 = vmul.f32 %v217, 1.442695
  %v230 = vpow.pop %v229
  %v231 = vmul.f32 %v218, 1.442695
  %v232 = vpow.pop %v231
  %v233 = vmul.f32 %v219, 1.442695
  %v234 = vpow.pop %v233
  %v235 = vmul.f32 %v220, 1.442695
  %v236 = vpow.pop %v235
  %v237 = vadd.f32 %v222, 1.0
  %v238 = vadd.f32 %v224, 1.0
  %v239 = vadd.f32 %v226, 1.0
  %v240 = vadd.f32 %v228, 1.0
  %v241 = vadd.f32 %v230, 1.0
  %v242 = vadd.f32 %v232, 1.0
  %v243 = vadd.f32 %v234, 1.0
  %v244 = vadd.f32 %v236, 1.0
  %v245 = vrcp.pop %v237
  %v246 = vmul.f32 %v237, %v245
  %v247 = vsub.f32 1.0, %v246
  %v248 = vmul.f32 %v245, %v247
  %v249 = vadd.f32 %v245, %v248
  %vm250 = vweird.f32 %v237
  %vm251 = vweird.f32 %v245
  %vm252 = vmor %vm250, %vm251
  %v253 = vsel %vm252, %v245, %v249
  %v254 = vand.u32 2147483647, %v237
  %vm255 = vcmp.eq.f32.partialorder %v254, 8.507059e+37
  %v256 = vand.u32 %v237, 2147483648
  %v257 = vor.u32 1.1754944e-38, %v256
  %v258 = vsel %vm255, %v257, %v253
  %v259 = vmul.f32 1.0, %v258
  %v260 = vrcp.pop %v238
  %v261 = vmul.f32 %v238, %v260
  %v262 = vsub.f32 1.0, %v261
  %v263 = vmul.f32 %v260, %v262
  %v264 = vadd.f32 %v260, %v263
  %vm265 = vweird.f32 %v238
  %vm266 = vweird.f32 %v260
  %vm267 = vmor %vm265, %vm266
  %v268 = vsel %vm267, %v260, %v264
  %v269 = vand.u32 2147483647, %v238
  %vm270 = vcmp.eq.f32.partialorder %v269, 8.507059e+37
  %v271 = vand.u32 %v238, 2147483648
  %v272 = vor.u32 1.1754944e-38, %v271
  %v273 = vsel %vm270, %v272, %v268
  %v274 = vmul.f32 1.0, %v273
  %v275 = vrcp.pop %v239
  %v276 = vmul.f32 %v239, %v275
  %v277 = vsub.f32 1.0, %v276
  %v278 = vmul.f32 %v275, %v277
  %v279 = vadd.f32 %v275, %v278
  %vm280 = vweird.f32 %v239
  %vm281 = vweird.f32 %v275
  %vm282 = vmor %vm280, %vm281
  %v283 = vsel %vm282, %v275, %v279
  %v284 = vand.u32 2147483647, %v239
  %vm285 = vcmp.eq.f32.partialorder %v284, 8.507059e+37
  %v286 = vand.u32 %v239, 2147483648
  %v287 = vor.u32 1.1754944e-38, %v286
  %v288 = vsel %vm285, %v287, %v283
  %v289 = vmul.f32 1.0, %v288
  %v290 = vrcp.pop %v240
  %v291 = vmul.f32 %v240, %v290
  %v292 = vsub.f32 1.0, %v291
  %v293 = vmul.f32 %v290, %v292
  %v294 = vadd.f32 %v290, %v293
  %vm295 = vweird.f32 %v240
  %vm296 = vweird.f32 %v290
  %vm297 = vmor %vm295, %vm296
  %v298 = vsel %vm297, %v290, %v294
  %v299 = vand.u32 2147483647, %v240
  %vm300 = vcmp.eq.f32.partialorder %v299, 8.507059e+37
  %v301 = vand.u32 %v240, 2147483648
  %v302 = vor.u32 1.1754944e-38, %v301
  %v303 = vsel %vm300, %v302, %v298
  %v304 = vmul.f32 1.0, %v303
  %v305 = vrcp.pop %v241
  %v306 = vmul.f32 %v241, %v305
  %v307 = vsub.f32 1.0, %v306
  %v308 = vmul.f32 %v305, %v307
  %v309 = vadd.f32 %v305, %v308
  %vm310 = vweird.f32 %v241
  %vm311 = vweird.f32 %v305
  %vm312 = vmor %vm310, %vm311
  %v313 = vsel %vm312, %v305, %v309
  %v314 = vand.u32 2147483647, %v241
  %vm315 = vcmp.eq.f32.partialorder %v314, 8.507059e+37
  %v316 = vand.u32 %v241, 2147483648
  %v317 = vor.u32 1.1754944e-38, %v316
  %v318 = vsel %vm315, %v317, %v313
  %v319 = vmul.f32 1.0, %v318
  %v320 = vrcp.pop %v242
  %v321 = vmul.f32 %v242, %v320
  %v322 = vsub.f32 1.0, %v321
  %v323 = vmul.f32 %v320, %v322
  %v324 = vadd.f32 %v320, %v323
  %vm325 = vweird.f32 %v242
  %vm326 = vweird.f32 %v320
  %vm327 = vmor %vm325, %vm326
  %v328 = vsel %vm327, %v320, %v324
  %v329 = vand.u32 2147483647, %v242
  %vm330 = vcmp.eq.f32.partialorder %v329, 8.507059e+37
  %v331 = vand.u32 %v242, 2147483648
  %v332 = vor.u32 1.1754944e-38, %v331
  %v333 = vsel %vm330, %v332, %v328
  %v334 = vmul.f32 1.0, %v333
  %v335 = vrcp.pop %v243
  %v336 = vmul.f32 %v243, %v335
  %v337 = vsub.f32 1.0, %v336
  %v338 = vmul.f32 %v335, %v337
  %v339 = vadd.f32 %v335, %v338
  %vm340 = vweird.f32 %v243
  %vm341 = vweird.f32 %v335
  %vm342 = vmor %vm340, %vm341
  %v343 = vsel %vm342, %v335, %v339
  %v344 = vand.u32 2147483647, %v243
  %vm345 = vcmp.eq.f32.partialorder %v344, 8.507059e+37
  %v346 = vand.u32 %v243, 2147483648
  %v347 = vor.u32 1.1754944e-38, %v346
  %v348 = vsel %vm345, %v347, %v343
  %v349 = vmul.f32 1.0, %v348
  %v350 = vrcp.pop %v244
  %v351 = vmul.f32 %v244, %v350
  %v352 = vsub.f32 1.0, %v351
  %v353 = vmul.f32 %v350, %v352
  %v354 = vadd.f32 %v350, %v353
  %vm355 = vweird.f32 %v244
  %vm356 = vweird.f32 %v350
  %vm357 = vmor %vm355, %vm356
  %v358 = vsel %vm357, %v350, %v354
  %v359 = vand.u32 2147483647, %v244
  %vm360 = vcmp.eq.f32.partialorder %v359, 8.507059e+37
  %v361 = vand.u32 %v244, 2147483648
  %v362 = vor.u32 1.1754944e-38, %v361
  %v363 = vsel %vm360, %v362, %v358
  %v364 = vmul.f32 1.0, %v363
  %v365 = vpack.c.bf16 %v274, %v259
  %v366 = vpack.c.bf16 %v304, %v289
  %v367 = vpack.c.bf16 %v334, %v319
  %v368 = vpack.c.bf16 %v364, %v349
  %v369 = vld [vmem:[%s4] sm:$0xf]
  %v370 = vld [vmem:[%s4 + $0x4] sm:$0xf]
  %v371 = vld [vmem:[%s4 + $0x8] sm:$0xf]
  %v372 = vld [vmem:[%s4 + $0xc] sm:$0xf]
  %v373 = vld [vmem:[%s4 + $0x10] sm:$0xf]
  %v374 = vld [vmem:[%s4 + $0x14] sm:$0xf]
  %v375 = vld [vmem:[%s4 + $0x18] sm:$0xf]
  %v376 = vld [vmem:[%s4 + $0x1c] sm:$0xf]
  %v377 = vld [vmem:[%s4 + $0x20] sm:$0xf]
  %v378 = vld [vmem:[%s4 + $0x24] sm:$0xf]
  %v379 = vld [vmem:[%s4 + $0x28] sm:$0xf]
  %v380 = vld [vmem:[%s4 + $0x2c] sm:$0xf]
  %v381 = vld [vmem:[%s4 + $0x30] sm:$0xf]
  %v382 = vld [vmem:[%s4 + $0x34] sm:$0xf]
  %v383 = vld [vmem:[%s4 + $0x38] sm:$0xf]
  %v384 = vld [vmem:[%s4 + $0x3c] sm:$0xf]
  %v385 = vld [vmem:[%s6 + $0x1] sm:$0x1]
  %v386 = vperm.slane %v385, 0
  %v403 = vunpack.c.l.b16 %v369
  %v404 = vunpack.c.l.b16 %v370
  %v405 = vunpack.c.l.b16 %v371
  %v406 = vunpack.c.l.b16 %v372
  %v407 = vunpack.c.l.b16 %v373
  %v408 = vunpack.c.l.b16 %v374
  %v409 = vunpack.c.l.b16 %v375
  %v410 = vunpack.c.l.b16 %v376
  %v411 = vunpack.c.l.b16 %v377
  %v412 = vunpack.c.l.b16 %v378
  %v413 = vunpack.c.l.b16 %v379
  %v414 = vunpack.c.l.b16 %v380
  %v415 = vunpack.c.l.b16 %v381
  %v416 = vunpack.c.l.b16 %v382
  %v417 = vunpack.c.l.b16 %v383
  %v418 = vunpack.c.l.b16 %v384
  %v419 = vpack.c.b16 %v404, %v403
  %v420 = vpack.c.b16 %v406, %v405
  %v421 = vpack.c.b16 %v408, %v407
  %v422 = vpack.c.b16 %v410, %v409
  %v423 = vpack.c.b16 %v412, %v411
  %v424 = vpack.c.b16 %v414, %v413
  %v425 = vpack.c.b16 %v416, %v415
  %v426 = vpack.c.b16 %v418, %v417
  %435 = vmatpush.bf16.msra.mxu0 %v426
  %436 = vmatpush.bf16.msra.mxu0 %v425
  %437 = vmatpush.bf16.msra.mxu0 %v424
  %438 = vmatpush.bf16.msra.mxu0 %v423
  %439 = vmatpush.bf16.msra.mxu0 %v422
  %440 = vmatpush.bf16.msra.mxu0 %v421
  %441 = vmatpush.bf16.msra.mxu0 %v420
  %442 = vmatpush.bf16.msra.mxu0 %v419
  %443 = vmatmul.bf16.gmra.mxu0 %v365
  %v444 = vpop.f32.mrf.mxu0
  %v445 = vadd.f32 %v386, %v444
  %v446 = vpop.f32.mrf.mxu0
  %v447 = vadd.f32 %v386, %v446
  %448 = vmatmul.bf16.gmra.mxu0 %v366
  %v449 = vpop.f32.mrf.mxu0
  %v450 = vadd.f32 %v386, %v449
  %v451 = vpop.f32.mrf.mxu0
  %v452 = vadd.f32 %v386, %v451
  %453 = vmatmul.bf16.gmra.mxu0 %v367
  %v454 = vpop.f32.mrf.mxu0
  %v455 = vadd.f32 %v386, %v454
  %v456 = vpop.f32.mrf.mxu0
  %v457 = vadd.f32 %v386, %v456
  %458 = vmatmul.bf16.gmra.mxu0 %v368
  %v459 = vpop.f32.mrf.mxu0
  %v460 = vadd.f32 %v386, %v459
  %v461 = vpop.f32.mrf.mxu0
  %v462 = vadd.f32 %v386, %v461
  %463 = vdwg.mxu0
  %v464 = vxor.u32 %v445, 2147483648
  %v465 = vxor.u32 %v447, 2147483648
  %v466 = vxor.u32 %v450, 2147483648
  %v467 = vxor.u32 %v452, 2147483648
  %v468 = vxor.u32 %v455, 2147483648
  %v469 = vxor.u32 %v457, 2147483648
  %v470 = vxor.u32 %v460, 2147483648
  %v471 = vxor.u32 %v462, 2147483648
  %v472 = vmul.f32 %v464, 1.442695
  %v473 = vpow.pop %v472
  %v474 = vmul.f32 %v465, 1.442695
  %v475 = vpow.pop %v474
  %v476 = vmul.f32 %v466, 1.442695
  %v477 = vpow.pop %v476
  %v478 = vmul.f32 %v467, 1.442695
  %v479 = vpow.pop %v478
  %v480 = vmul.f32 %v468, 1.442695
  %v481 = vpow.pop %v480
  %v482 = vmul.f32 %v469, 1.442695
  %v483 = vpow.pop %v482
  %v484 = vmul.f32 %v470, 1.442695
  %v485 = vpow.pop %v484
  %v486 = vmul.f32 %v471, 1.442695
  %v487 = vpow.pop %v486
  %v488 = vadd.f32 %v473, 1.0
  %v489 = vadd.f32 %v475, 1.0
  %v490 = vadd.f32 %v477, 1.0
  %v491 = vadd.f32 %v479, 1.0
  %v492 = vadd.f32 %v481, 1.0
  %v493 = vadd.f32 %v483, 1.0
  %v494 = vadd.f32 %v485, 1.0
  %v495 = vadd.f32 %v487, 1.0
  %v496 = vrcp.pop %v488
  %v497 = vmul.f32 %v488, %v496
  %v498 = vsub.f32 1.0, %v497
  %v499 = vmul.f32 %v496, %v498
  %v500 = vadd.f32 %v496, %v499
  %vm501 = vweird.f32 %v488
  %vm502 = vweird.f32 %v496
  %vm503 = vmor %vm501, %vm502
  %v504 = vsel %vm503, %v496, %v500
  %v505 = vand.u32 2147483647, %v488
  %vm506 = vcmp.eq.f32.partialorder %v505, 8.507059e+37
  %v507 = vand.u32 %v488, 2147483648
  %v508 = vor.u32 1.1754944e-38, %v507
  %v509 = vsel %vm506, %v508, %v504
  %v510 = vmul.f32 1.0, %v509
  %v511 = vrcp.pop %v489
  %v512 = vmul.f32 %v489, %v511
  %v513 = vsub.f32 1.0, %v512
  %v514 = vmul.f32 %v511, %v513
  %v515 = vadd.f32 %v511, %v514
  %vm516 = vweird.f32 %v489
  %vm517 = vweird.f32 %v511
  %vm518 = vmor %vm516, %vm517
  %v519 = vsel %vm518, %v511, %v515
  %v520 = vand.u32 2147483647, %v489
  %vm521 = vcmp.eq.f32.partialorder %v520, 8.507059e+37
  %v522 = vand.u32 %v489, 2147483648
  %v523 = vor.u32 1.1754944e-38, %v522
  %v524 = vsel %vm521, %v523, %v519
  %v525 = vmul.f32 1.0, %v524
  %v526 = vrcp.pop %v490
  %v527 = vmul.f32 %v490, %v526
  %v528 = vsub.f32 1.0, %v527
  %v529 = vmul.f32 %v526, %v528
  %v530 = vadd.f32 %v526, %v529
  %vm531 = vweird.f32 %v490
  %vm532 = vweird.f32 %v526
  %vm533 = vmor %vm531, %vm532
  %v534 = vsel %vm533, %v526, %v530
  %v535 = vand.u32 2147483647, %v490
  %vm536 = vcmp.eq.f32.partialorder %v535, 8.507059e+37
  %v537 = vand.u32 %v490, 2147483648
  %v538 = vor.u32 1.1754944e-38, %v537
  %v539 = vsel %vm536, %v538, %v534
  %v540 = vmul.f32 1.0, %v539
  %v541 = vrcp.pop %v491
  %v542 = vmul.f32 %v491, %v541
  %v543 = vsub.f32 1.0, %v542
  %v544 = vmul.f32 %v541, %v543
  %v545 = vadd.f32 %v541, %v544
  %vm546 = vweird.f32 %v491
  %vm547 = vweird.f32 %v541
  %vm548 = vmor %vm546, %vm547
  %v549 = vsel %vm548, %v541, %v545
  %v550 = vand.u32 2147483647, %v491
  %vm551 = vcmp.eq.f32.partialorder %v550, 8.507059e+37
  %v552 = vand.u32 %v491, 2147483648
  %v553 = vor.u32 1.1754944e-38, %v552
  %v554 = vsel %vm551, %v553, %v549
  %v555 = vmul.f32 1.0, %v554
  %v556 = vrcp.pop %v492
  %v557 = vmul.f32 %v492, %v556
  %v558 = vsub.f32 1.0, %v557
  %v559 = vmul.f32 %v556, %v558
  %v560 = vadd.f32 %v556, %v559
  %vm561 = vweird.f32 %v492
  %vm562 = vweird.f32 %v556
  %vm563 = vmor %vm561, %vm562
  %v564 = vsel %vm563, %v556, %v560
  %v565 = vand.u32 2147483647, %v492
  %vm566 = vcmp.eq.f32.partialorder %v565, 8.507059e+37
  %v567 = vand.u32 %v492, 2147483648
  %v568 = vor.u32 1.1754944e-38, %v567
  %v569 = vsel %vm566, %v568, %v564
  %v570 = vmul.f32 1.0, %v569
  %v571 = vrcp.pop %v493
  %v572 = vmul.f32 %v493, %v571
  %v573 = vsub.f32 1.0, %v572
  %v574 = vmul.f32 %v571, %v573
  %v575 = vadd.f32 %v571, %v574
  %vm576 = vweird.f32 %v493
  %vm577 = vweird.f32 %v571
  %vm578 = vmor %vm576, %vm577
  %v579 = vsel %vm578, %v571, %v575
  %v580 = vand.u32 2147483647, %v493
  %vm581 = vcmp.eq.f32.partialorder %v580, 8.507059e+37
  %v582 = vand.u32 %v493, 2147483648
  %v583 = vor.u32 1.1754944e-38, %v582
  %v584 = vsel %vm581, %v583, %v579
  %v585 = vmul.f32 1.0, %v584
  %v586 = vrcp.pop %v494
  %v587 = vmul.f32 %v494, %v586
  %v588 = vsub.f32 1.0, %v587
  %v589 = vmul.f32 %v586, %v588
  %v590 = vadd.f32 %v586, %v589
  %vm591 = vweird.f32 %v494
  %vm592 = vweird.f32 %v586
  %vm593 = vmor %vm591, %vm592
  %v594 = vsel %vm593, %v586, %v590
  %v595 = vand.u32 2147483647, %v494
  %vm596 = vcmp.eq.f32.partialorder %v595, 8.507059e+37
  %v597 = vand.u32 %v494, 2147483648
  %v598 = vor.u32 1.1754944e-38, %v597
  %v599 = vsel %vm596, %v598, %v594
  %v600 = vmul.f32 1.0, %v599
  %v601 = vrcp.pop %v495
  %v602 = vmul.f32 %v495, %v601
  %v603 = vsub.f32 1.0, %v602
  %v604 = vmul.f32 %v601, %v603
  %v605 = vadd.f32 %v601, %v604
  %vm606 = vweird.f32 %v495
  %vm607 = vweird.f32 %v601
  %vm608 = vmor %vm606, %vm607
  %v609 = vsel %vm608, %v601, %v605
  %v610 = vand.u32 2147483647, %v495
  %vm611 = vcmp.eq.f32.partialorder %v610, 8.507059e+37
  %v612 = vand.u32 %v495, 2147483648
  %v613 = vor.u32 1.1754944e-38, %v612
  %v614 = vsel %vm611, %v613, %v609
  %v615 = vmul.f32 1.0, %v614
  %616 = vst [vmem:[%s9] sm:$0xff] %v510
  %617 = vst [vmem:[%s9 + $0x8] sm:$0xff] %v525
  %618 = vst [vmem:[%s9 + $0x10] sm:$0xff] %v540
  %619 = vst [vmem:[%s9 + $0x18] sm:$0xff] %v555
  %620 = vst [vmem:[%s9 + $0x20] sm:$0xff] %v570
  %621 = vst [vmem:[%s9 + $0x28] sm:$0xff] %v585
  %622 = vst [vmem:[%s9 + $0x30] sm:$0xff] %v600
  %623 = vst [vmem:[%s9 + $0x38] sm:$0xff] %v615
  %v624 = vpack.c.bf16 %v525, %v510
  %v625 = vpack.c.bf16 %v555, %v540
  %v626 = vpack.c.bf16 %v585, %v570
  %v627 = vpack.c.bf16 %v615, %v600
  %v628 = vld [vmem:[%s5] sm:$0xf]
  %v629 = vld [vmem:[%s5 + $0x4] sm:$0xf]
  %v630 = vld [vmem:[%s5 + $0x8] sm:$0xf]
  %v631 = vld [vmem:[%s5 + $0xc] sm:$0xf]
  %v632 = vld [vmem:[%s5 + $0x10] sm:$0xf]
  %v633 = vld [vmem:[%s5 + $0x14] sm:$0xf]
  %v634 = vld [vmem:[%s5 + $0x18] sm:$0xf]
  %v635 = vld [vmem:[%s5 + $0x1c] sm:$0xf]
  %v636 = vld [vmem:[%s5 + $0x20] sm:$0xf]
  %v637 = vld [vmem:[%s5 + $0x24] sm:$0xf]
  %v638 = vld [vmem:[%s5 + $0x28] sm:$0xf]
  %v639 = vld [vmem:[%s5 + $0x2c] sm:$0xf]
  %v640 = vld [vmem:[%s5 + $0x30] sm:$0xf]
  %v641 = vld [vmem:[%s5 + $0x34] sm:$0xf]
  %v642 = vld [vmem:[%s5 + $0x38] sm:$0xf]
  %v643 = vld [vmem:[%s5 + $0x3c] sm:$0xf]
  %v644 = vld [vmem:[%s7] sm:$0x1]
  %v646 = vperm.slane %v644, 0
  %v664 = vunpack.c.l.b16 %v628
  %v665 = vunpack.c.l.b16 %v629
  %v666 = vunpack.c.l.b16 %v630
  %v667 = vunpack.c.l.b16 %v631
  %v668 = vunpack.c.l.b16 %v632
  %v669 = vunpack.c.l.b16 %v633
  %v670 = vunpack.c.l.b16 %v634
  %v671 = vunpack.c.l.b16 %v635
  %v672 = vunpack.c.l.b16 %v636
  %v673 = vunpack.c.l.b16 %v637
  %v674 = vunpack.c.l.b16 %v638
  %v675 = vunpack.c.l.b16 %v639
  %v676 = vunpack.c.l.b16 %v640
  %v677 = vunpack.c.l.b16 %v641
  %v678 = vunpack.c.l.b16 %v642
  %v679 = vunpack.c.l.b16 %v643
  %v680 = vpack.c.b16 %v665, %v664
  %v681 = vpack.c.b16 %v667, %v666
  %v682 = vpack.c.b16 %v669, %v668
  %v683 = vpack.c.b16 %v671, %v670
  %v684 = vpack.c.b16 %v673, %v672
  %v685 = vpack.c.b16 %v675, %v674
  %v686 = vpack.c.b16 %v677, %v676
  %v687 = vpack.c.b16 %v679, %v678
  %696 = vmatpush.bf16.msra.mxu0 %v687
  %697 = vmatpush.bf16.msra.mxu0 %v686
  %698 = vmatpush.bf16.msra.mxu0 %v685
  %699 = vmatpush.bf16.msra.mxu0 %v684
  %700 = vmatpush.bf16.msra.mxu0 %v683
  %701 = vmatpush.bf16.msra.mxu0 %v682
  %702 = vmatpush.bf16.msra.mxu0 %v681
  %703 = vmatpush.bf16.msra.mxu0 %v680
  %704 = vmatmul.bf16.gmra.mxu0 %v624
  %v705 = vpop.f32.mrf.mxu0
  %v706 = vadd.f32 %v646, %v705
  %v707 = vpop.f32.mrf.mxu0
  %v708 = vadd.f32 %v646, %v707
  %709 = vmatmul.bf16.gmra.mxu0 %v625
  %v710 = vpop.f32.mrf.mxu0
  %v711 = vadd.f32 %v646, %v710
  %v712 = vpop.f32.mrf.mxu0
  %v713 = vadd.f32 %v646, %v712
  %714 = vmatmul.bf16.gmra.mxu0 %v626
  %v715 = vpop.f32.mrf.mxu0
  %v716 = vadd.f32 %v646, %v715
  %v717 = vpop.f32.mrf.mxu0
  %v718 = vadd.f32 %v646, %v717
  %719 = vmatmul.bf16.gmra.mxu0 %v627
  %v720 = vpop.f32.mrf.mxu0
  %v721 = vadd.f32 %v646, %v720
  %v722 = vpop.f32.mrf.mxu0
  %v723 = vadd.f32 %v646, %v722
  %724 = vdwg.mxu0
  %vm725 = vcmask 31744
  %726 = vst.msk [vmem:[%s8] sm:$0xff] %vm725, %v706
  %727 = vst.msk [vmem:[%s8 + $0x8] sm:$0xff] %vm725, %v708
  %728 = vst.msk [vmem:[%s8 + $0x10] sm:$0xff] %vm725, %v711
  %729 = vst.msk [vmem:[%s8 + $0x18] sm:$0xff] %vm725, %v713
  %730 = vst.msk [vmem:[%s8 + $0x20] sm:$0xff] %vm725, %v716
  %731 = vst.msk [vmem:[%s8 + $0x28] sm:$0xff] %vm725, %v718
  %732 = vst.msk [vmem:[%s8 + $0x30] sm:$0xff] %vm725, %v721
  %733 = vst.msk [vmem:[%s8 + $0x38] sm:$0xff] %vm725, %v723
  // Predicated region
  $region34: #{rating_prediction.1} parent=0 // pred_check
    _
  $region35: #{rating_prediction.1} parent=0 // pred_check_branch
    %735 = sbr.rel (0) target = $region37
  $region36: #{rating_prediction.1} parent=0 // pred_region
    _
  $region37: #{rating_prediction.1} parent=0 // pred_fallthru
    _
  // Predicated region
  $region38: #{rating_prediction.1} parent=0 // pred_check
    _
  $region39: #{rating_prediction.1} parent=0 // pred_check_branch
    %737 = sbr.rel (0) target = $region41
  $region40: #{rating_prediction.1} parent=0 // pred_region
    _
  $region41: #{rating_prediction.1} parent=0 // pred_fallthru
    _
  // Predicated region
  $region42: #{rating_prediction.1} parent=0 // pred_check
    _
  $region43: #{rating_prediction.1} parent=0 // pred_check_branch
    %739 = sbr.rel (0) target = $region45
  $region44: #{rating_prediction.1} parent=0 // pred_region
    _
  $region45: #{rating_prediction.1} parent=0 // pred_fallthru
    _
  // Predicated region
  $region46: #{rating_prediction.1} parent=0 // pred_check
    _
  $region47: #{rating_prediction.1} parent=0 // pred_check_branch
    %741 = sbr.rel (0) target = $region49
  $region48: #{rating_prediction.1} parent=0 // pred_region
    _
  $region49: #{rating_prediction.1} parent=0 // pred_fallthru
    _

</llo_original>
